<compile_context>
chip_gen: v7x
topology: tpu7x:2x2x1
jax: 0.10.0
libtpu: 0.0.40
codegen_flags: <defaults>
</compile_context>

<pallas_src>
import jax
import jax.numpy as jnp
from jax.experimental import pallas as pl
from jax.experimental.pallas import tpu as pltpu  # noqa: F401  (TPU backend)

REP = 4  # number of copies concatenated by torch.cat((y, y, y, y), ...)


def _tanh_cat_kernel(x_ref, o_ref):
    # x_ref: (B, CD) input tile; o_ref: (REP, B, CD) output block.
    t = jnp.tanh(2.0 * x_ref[...])                       # one EUP pass, f32
    o_ref[...] = jnp.broadcast_to(t[None], o_ref.shape)  # single aligned store


@jax.jit
def model_forward(x):
    B, C, D = x.shape
    CD = C * D
    # Free, contiguous flatten so the lane axis is last.
    x2 = x.reshape(B, CD)

    out3 = pl.pallas_call(
        _tanh_cat_kernel,
        out_shape=jax.ShapeDtypeStruct((REP, B, CD), x.dtype),
        in_specs=[pl.BlockSpec((B, CD), lambda: (0, 0))],
        out_specs=pl.BlockSpec((REP, B, CD), lambda: (0, 0, 0)),
    )(x2)

    # (REP, B, CD) -> (REP*B, CD): contiguous, free inside the jit.
    return out3.reshape(REP * B, CD)


if __name__ == "__main__":
    key = jax.random.PRNGKey(0)
    x = jax.random.normal(key, (5, 3, 4), dtype=jnp.float32)

    out = model_forward(x)
    out = jax.block_until_ready(out)

    # Reference (plain JAX):
    #   cat((y,y,y,y), dim=0) of (5,3,4) -> (20,3,4); view(20,-1) -> (20,12); tanh
    y = 2.0 * x
    ref = jnp.tanh(jnp.concatenate([y, y, y, y], axis=0).reshape(REP * 5, -1))
    assert out.shape == (20, 12), out.shape
    assert out.dtype == jnp.float32
    assert jnp.allclose(out, ref, atol=1e-6, rtol=1e-6)

    print("KERNEL_OK")
</pallas_src>

<mosaic_0001>
module attributes {stable_mosaic.version = 11 : i64} {
  func.func @_tanh_cat_kernel(%arg0: memref<5x12xf32, #tpu.memory_space<vmem>>, %arg1: memref<4x5x12xf32, #tpu.memory_space<vmem>>) attributes {dimension_semantics = [], scalar_prefetch = 0 : i64, scratch_operands = 0 : i64, tpu.core_type = #tpu.core_type<tc>} {
    %c0 = arith.constant 0 : index
    %c0_0 = arith.constant 0 : index
    %0 = vector.load %arg0[%c0, %c0_0] : memref<5x12xf32, #tpu.memory_space<vmem>>, vector<5x12xf32>
    %cst = arith.constant 2.000000e+00 : f32
    %1 = vector.broadcast %cst : f32 to vector<5x12xf32>
    %2 = arith.mulf %1, %0 : vector<5x12xf32>
    %3 = math.tanh %2 : vector<5x12xf32>
    %4 = vector.shape_cast %3 : vector<5x12xf32> to vector<1x5x12xf32>
    %5 = vector.shape_cast %4 : vector<1x5x12xf32> to vector<1x5x12xf32>
    %6 = vector.broadcast %5 : vector<1x5x12xf32> to vector<4x5x12xf32>
    %c0_1 = arith.constant 0 : index
    %c0_2 = arith.constant 0 : index
    %c0_3 = arith.constant 0 : index
    %7 = vector.load %arg1[%c0_1, %c0_2, %c0_3] : memref<4x5x12xf32, #tpu.memory_space<vmem>>, vector<4x5x12xf32>
    tpu.vector_store %arg1[%c0_1, %c0_2, %c0_3], %6 {strides = array<i32>} : memref<4x5x12xf32, #tpu.memory_space<vmem>>, vector<4x5x12xf32>,
    return
  }
}

</mosaic_0001>

<llo_original>
// kernel: model_forward.1
$region0: #{model_forward.1}
  #allocation0 [shape = 'u32[]', space=smem, size = 0x4, offset = 0x4, fixed_abs, tag = 'smem constant byte address 0x4 - core index']
  #allocation1 [shape = 'u32[144,128]{1,0:T(1,128)}', space=vmem, size = 0x12000, scoped, tag = 'internal scratch']
  %s0 = inlined_call_operand.vmem [shape: f32[5,12], index: 0, kind: input, shape index: {}]
  %s1 = inlined_call_operand.vmem [shape: f32[4,5,12], index: 1, kind: output, shape index: {}]
  %s2 = sld [smem:[#allocation0]]
  $region14: #{model_forward.1} parent=0
    _
  %s4 = ssub.s32 1, %s2
  %s5 = scalar_select 0, %s4, %s2
  // Predicated region
  $region2: #{model_forward.1} parent=0 // pred_check
    _
  $region3: #{model_forward.1} parent=0 // pred_check_branch
    %7 = sbr.rel (0) target = $region5
  $region4: #{model_forward.1} parent=0 // pred_region
    _
  $region5: #{model_forward.1} parent=0 // pred_fallthru
    _
  %v8 = vld [vmem:[%s0] sm:$0x1f]
  %v9 = vmul.f32 %v8, 2.0
  %v10 = vtanh.pop %v9
  %vm11 = vcmask 94208
  %12 = vst.msk [vmem:[%s1] sm:$0x1f] %vm11, %v10
  %13 = vst.msk [vmem:[%s1 + $0x8] sm:$0x1f] %vm11, %v10
  %14 = vst.msk [vmem:[%s1 + $0x10] sm:$0x1f] %vm11, %v10
  %15 = vst.msk [vmem:[%s1 + $0x18] sm:$0x1f] %vm11, %v10
  // Predicated region
  $region6: #{model_forward.1} parent=0 // pred_check
    _
  $region7: #{model_forward.1} parent=0 // pred_check_branch
    %17 = sbr.rel (0) target = $region9
  $region8: #{model_forward.1} parent=0 // pred_region
    _
  $region9: #{model_forward.1} parent=0 // pred_fallthru
    _
  // Predicated region
  $region10: #{model_forward.1} parent=0 // pred_check
    _
  $region11: #{model_forward.1} parent=0 // pred_check_branch
    %19 = sbr.rel (0) target = $region13
  $region12: #{model_forward.1} parent=0 // pred_region
    _
  $region13: #{model_forward.1} parent=0 // pred_fallthru
    _

</llo_original>
